<compile_context>
chip_gen: v7x
topology: tpu7x:2x2x1
jax: 0.10.0
libtpu: 0.0.40
codegen_flags: <defaults>
</compile_context>

<pallas_src>
import jax
import jax.numpy as jnp
from jax.experimental import pallas as pl
from jax.experimental.pallas import tpu as pltpu

_LANES = 128


def _sums_kernel(x_ref, s1_ref, s2_ref):
    """Accumulate per-row lane partials of sum(x) and sum(x*x).

    x_ref:  (BR, BT) tile of the (rows, pixels) matrix.
    s1_ref, s2_ref: (BR, 128) lane-parallel accumulators, resident across the
    HW-tile grid axis (output block index constant along that axis).
    """
    t = pl.program_id(1)

    @pl.when(t == 0)
    def _():
        s1_ref[...] = jnp.zeros_like(s1_ref)
        s2_ref[...] = jnp.zeros_like(s2_ref)

    n_chunks = x_ref.shape[1] // _LANES
    s1 = s1_ref[...]
    s2 = s2_ref[...]
    # Statically-unrolled loop over 128-lane vreg columns: pure VPU add/FMA
    # work, no cross-lane reduction per grid step.
    for j in range(n_chunks):
        c = x_ref[:, j * _LANES:(j + 1) * _LANES].astype(jnp.float32)
        s1 = s1 + c
        s2 = s2 + c * c
    s1_ref[...] = s1
    s2_ref[...] = s2


def us_seg_loss(x, occupancy=0.21, variability=0.0181):
    """x: (N, C, H, W). Returns scalar f32 matching USSegLoss().forward(x)."""
    N, C, H, W = x.shape
    HW = H * W
    NC = N * C

    BR = 8
    # Lane tile: multiple of 128, capped at 32768 lanes -> <=1 MiB f32 per
    # buffer (double-buffered input <=2 MiB: fits every chip's VMEM budget
    # with large headroom while staying near the HBM roofline).
    hw128 = pl.cdiv(HW, _LANES) * _LANES
    BT = min(hw128, 256 * _LANES)
    HW_pad = pl.cdiv(HW, BT) * BT
    NC_pad = pl.cdiv(NC, BR) * BR

    x2 = x.reshape(NC, HW)
    if NC_pad != NC or HW_pad != HW:
        # zero padding is neutral for sum / sum-of-squares
        x2 = jnp.pad(x2, ((0, NC_pad - NC), (0, HW_pad - HW)))

    grid = (NC_pad // BR, HW_pad // BT)
    bytes_accessed = int(NC_pad * HW_pad * jnp.dtype(x2.dtype).itemsize
                         + 2 * NC_pad * _LANES * 4)

    s1_lanes, s2_lanes = pl.pallas_call(
        _sums_kernel,
        out_shape=(jax.ShapeDtypeStruct((NC_pad, _LANES), jnp.float32),
                   jax.ShapeDtypeStruct((NC_pad, _LANES), jnp.float32)),
        grid_spec=pltpu.PrefetchScalarGridSpec(
            num_scalar_prefetch=0,
            grid=grid,
            in_specs=[pl.BlockSpec((BR, BT), lambda r, t: (r, t))],
            out_specs=[pl.BlockSpec((BR, _LANES), lambda r, t: (r, 0)),
                       pl.BlockSpec((BR, _LANES), lambda r, t: (r, 0))],
        ),
        compiler_params=pltpu.CompilerParams(
            dimension_semantics=("parallel", "arbitrary"),
            vmem_limit_bytes=32 * 1024 * 1024,
        ),
        cost_estimate=pl.CostEstimate(
            flops=3 * NC_pad * HW_pad,
            transcendentals=0,
            bytes_accessed=bytes_accessed,
        ),
    )(x2)

    # ---- tiny O(N*C) epilogue (final lane reduce + score combine) ----
    s1 = jnp.sum(s1_lanes[:NC], axis=1).reshape(N, C)   # sum_HW x
    s2 = jnp.sum(s2_lanes[:NC], axis=1).reshape(N, C)   # sum_HW x^2

    hw = jnp.float32(HW)
    screen_means = s1 / hw                               # (N, C)
    global_mean = jnp.sum(s1) / (NC * hw)

    occupancy_score = jnp.square(global_mean - occupancy)

    # unbiased (correction=1) variances, matching torch.var defaults
    var_hw = (s2 - hw * jnp.square(screen_means)) / (hw - 1.0)
    ch_mean = jnp.mean(screen_means, axis=1, keepdims=True)
    ch_var = jnp.sum(jnp.square(screen_means - ch_mean), axis=1) / (C - 1)

    channel_var_score = jnp.mean(jnp.square(ch_var - variability))
    dist_from_exponential = jnp.mean(jnp.square(var_hw - jnp.square(screen_means)))

    # TODO(synk): the random.randrange(700)-gated debug print in the PyTorch
    # module is a host-side side effect with no Pallas equivalent; omitted.
    return occupancy_score + channel_var_score + dist_from_exponential


if __name__ == "__main__":
    key = jax.random.PRNGKey(0)
    x = jax.random.normal(key, (2, 4, 16, 16), dtype=jnp.float32)

    result = jax.block_until_ready(us_seg_loss(x))

    # Pure-JAX reference implementing USSegLoss.sq_stat_score (torch-unbiased vars).
    N, C, H, W = x.shape
    flat = x.reshape(N, C, H * W)
    screen_means = jnp.mean(flat, axis=2)
    ref = (jnp.square(jnp.mean(x) - 0.21)
           + jnp.mean(jnp.square(jnp.var(screen_means, axis=1, ddof=1) - 0.0181))
           + jnp.mean(jnp.square(jnp.var(flat, axis=2, ddof=1)
                                 - jnp.square(screen_means))))
    assert jnp.allclose(result, ref, rtol=1e-4, atol=1e-4), (result, ref)

    print("KERNEL_OK")
</pallas_src>

<mosaic_0001>
module attributes {stable_mosaic.version = 11 : i64} {
  func.func @_sums_kernel(%arg0: i32, %arg1: i32, %arg2: memref<8x256xf32, #tpu.memory_space<vmem>>, %arg3: memref<8x128xf32, #tpu.memory_space<vmem>>, %arg4: memref<8x128xf32, #tpu.memory_space<vmem>>) attributes {dimension_semantics = [#tpu.dimension_semantics<parallel>, #tpu.dimension_semantics<arbitrary>], iteration_bounds = array<i64: 1, 1>, scalar_prefetch = 0 : i64, scratch_operands = 0 : i64, tpu.core_type = #tpu.core_type<tc>, window_params = [{transform_indices = @transform_0, window_bounds = array<i64: 8, 256>}, {transform_indices = @transform_1, window_bounds = array<i64: 8, 128>}, {transform_indices = @transform_2, window_bounds = array<i64: 8, 128>}]} {
    %c0_i32 = arith.constant 0 : i32
    %0 = arith.cmpi eq, %arg1, %c0_i32 : i32
    %1 = arith.extui %0 : i1 to i32
    %c0_i32_0 = arith.constant 0 : i32
    %2 = arith.cmpi ne, %1, %c0_i32_0 : i32
    scf.if %2 {
      %cst = arith.constant 0.000000e+00 : f32
      %15 = vector.broadcast %cst : f32 to vector<8x128xf32>
      %c0_11 = arith.constant 0 : index
      %c0_12 = arith.constant 0 : index
      %16 = vector.load %arg3[%c0_11, %c0_12] : memref<8x128xf32, #tpu.memory_space<vmem>>, vector<8x128xf32>
      tpu.vector_store %arg3[%c0_11, %c0_12], %15 {strides = array<i32>} : memref<8x128xf32, #tpu.memory_space<vmem>>, vector<8x128xf32>,
      %cst_13 = arith.constant 0.000000e+00 : f32
      %17 = vector.broadcast %cst_13 : f32 to vector<8x128xf32>
      %c0_14 = arith.constant 0 : index
      %c0_15 = arith.constant 0 : index
      %18 = vector.load %arg4[%c0_14, %c0_15] : memref<8x128xf32, #tpu.memory_space<vmem>>, vector<8x128xf32>
      tpu.vector_store %arg4[%c0_14, %c0_15], %17 {strides = array<i32>} : memref<8x128xf32, #tpu.memory_space<vmem>>, vector<8x128xf32>,
    } else {
    }
    %c0 = arith.constant 0 : index
    %c0_1 = arith.constant 0 : index
    %3 = vector.load %arg3[%c0, %c0_1] : memref<8x128xf32, #tpu.memory_space<vmem>>, vector<8x128xf32>
    %c0_2 = arith.constant 0 : index
    %c0_3 = arith.constant 0 : index
    %4 = vector.load %arg4[%c0_2, %c0_3] : memref<8x128xf32, #tpu.memory_space<vmem>>, vector<8x128xf32>
    %c0_4 = arith.constant 0 : index
    %c0_5 = arith.constant 0 : index
    %5 = vector.load %arg2[%c0_4, %c0_5] : memref<8x256xf32, #tpu.memory_space<vmem>>, vector<8x128xf32>
    %6 = arith.addf %3, %5 : vector<8x128xf32>
    %7 = arith.mulf %5, %5 : vector<8x128xf32>
    %8 = arith.addf %4, %7 : vector<8x128xf32>
    %c0_6 = arith.constant 0 : index
    %c128 = arith.constant 128 : index
    %9 = vector.load %arg2[%c0_6, %c128] : memref<8x256xf32, #tpu.memory_space<vmem>>, vector<8x128xf32>
    %10 = arith.addf %6, %9 : vector<8x128xf32>
    %11 = arith.mulf %9, %9 : vector<8x128xf32>
    %12 = arith.addf %8, %11 : vector<8x128xf32>
    %c0_7 = arith.constant 0 : index
    %c0_8 = arith.constant 0 : index
    %13 = vector.load %arg3[%c0_7, %c0_8] : memref<8x128xf32, #tpu.memory_space<vmem>>, vector<8x128xf32>
    tpu.vector_store %arg3[%c0_7, %c0_8], %10 {strides = array<i32>} : memref<8x128xf32, #tpu.memory_space<vmem>>, vector<8x128xf32>,
    %c0_9 = arith.constant 0 : index
    %c0_10 = arith.constant 0 : index
    %14 = vector.load %arg4[%c0_9, %c0_10] : memref<8x128xf32, #tpu.memory_space<vmem>>, vector<8x128xf32>
    tpu.vector_store %arg4[%c0_9, %c0_10], %12 {strides = array<i32>} : memref<8x128xf32, #tpu.memory_space<vmem>>, vector<8x128xf32>,
    return
  }
  func.func @transform_0(%arg0: i32, %arg1: i32) -> (i32, i32) {
    %c0_i32 = arith.constant 0 : i32
    return %arg0, %arg1 : i32, i32
  }
  func.func @transform_1(%arg0: i32, %arg1: i32) -> (i32, i32) {
    %c0_i32 = arith.constant 0 : i32
    %c0_i32_0 = arith.constant 0 : i32
    return %arg0, %c0_i32 : i32, i32
  }
  func.func @transform_2(%arg0: i32, %arg1: i32) -> (i32, i32) {
    %c0_i32 = arith.constant 0 : i32
    %c0_i32_0 = arith.constant 0 : i32
    return %arg0, %c0_i32 : i32, i32
  }
}

</mosaic_0001>

<llo_original>
// kernel: tpu_custom_call.1
$region0: #{tpu_custom_call.1}
  #allocation0 [shape = 'u32[]', space=smem, size = 0x4, offset = 0x4, fixed_abs, tag = 'smem constant byte address 0x4 - core index']
  #allocation1 [shape = 'u32[144,128]{1,0:T(1,128)}', space=vmem, size = 0x12000, scoped, tag = 'internal scratch']
  %s0 = inlined_call_operand.hbm [shape: f32[8,256], index: 0, kind: input, shape index: {}]
  %s1 = inlined_call_operand.hbm [shape: f32[8,128], index: 1, kind: output, shape index: {0}]
  %s2 = inlined_call_operand.hbm [shape: f32[8,128], index: 2, kind: output, shape index: {1}]
  %3 = xla_tuple %s1, %s2
  %s4 = sld [smem:[#allocation0]]
  $region30: #{tpu_custom_call.1} parent=0
    _
  %s6 = ssub.s32 1, %s4
  %s7 = scalar_select 0, %s6, %s4
  $region1: #{tpu_custom_call.1} parent=0
    #allocation2 [shape = 'u8[8192]{0}', space=vmem, size = 0x2000, scoped, tag = 'input window, operand 0, single buffered']
    #allocation3 [shape = 's32[1]{0}', space=sflag, size = 0x4, scoped, tag = 'scoped memory for tpu_custom_call.1']
    #allocation4 [shape = 's32[1]{0}', space=sflag, size = 0x4, scoped, tag = 'scoped memory for tpu_custom_call.1']
    #allocation5 [shape = 'u8[4096]{0}', space=vmem, size = 0x1000, scoped, tag = 'output window, operand 0, single buffered']
    #allocation6 [shape = 'u8[4096]{0}', space=vmem, size = 0x1000, scoped, tag = 'output window, operand 1, single buffered']
    #allocation7 [shape = 's32[1]{0}', space=sflag, size = 0x4, scoped, tag = 'scoped memory for tpu_custom_call.1']
    %8 = vsyncpa [#allocation3], 0
    %9 = vsyncpa [#allocation4], 0
    %10 = vsyncpa [#allocation7], 0
    // Predicated region
    $region2: #{tpu_custom_call.1} parent=1 // pred_check
      _
    $region3: #{tpu_custom_call.1} parent=1 // pred_check_branch
      %12 = sbr.rel (0) target = $region5
    $region4: #{tpu_custom_call.1} parent=1 // pred_region
      %s14 = ssub.s32 256, 256
      %15 = vsyncadd [#allocation3], %s14
      %s17 = sshll.u32 [#allocation2], 4
      %s18 = int_to_ptr.vmem [resolvable:$true] %s17
      %20 = dma.hbm_to_vmem [thread:$0]  %s0, 256, %s18, [#allocation3]
    $region5: #{tpu_custom_call.1} parent=1 // pred_fallthru
      _
    // Predicated region
    $region6: #{tpu_custom_call.1} parent=1 // pred_check
      _
    $region7: #{tpu_custom_call.1} parent=1 // pred_check_branch
      %22 = sbr.rel (0) target = $region9
    $region8: #{tpu_custom_call.1} parent=1 // pred_region
      %23 = dma.done [#allocation3], 256
    $region9: #{tpu_custom_call.1} parent=1 // pred_fallthru
      _
    %p24 = scmp.eq.s32.totalorder 0, 0
    // Predicated region
    $region10: #{tpu_custom_call.1} parent=1 // pred_check
      %p25 = pneg %p24
    $region11: #{tpu_custom_call.1} parent=1 // pred_check_branch
      %27 = sbr.rel (%p25) target = $region13
    $region12: #{tpu_custom_call.1} parent=1 // pred_region
      %28 = vst [vmem:[#allocation5] sm:$0xff] 0.0
      %29 = vst [vmem:[#allocation6] sm:$0xff] 0.0
    $region13: #{tpu_custom_call.1} parent=1 // pred_fallthru
      _
    %v30 = vld [vmem:[#allocation5] sm:$0xff]
    %v31 = vld [vmem:[#allocation6] sm:$0xff]
    %v32 = vld [vmem:[#allocation2] sm:$0xff]
    %v33 = vadd.f32 %v30, %v32
    %v34 = vmul.f32 %v32, %v32
    %v35 = vadd.f32 %v31, %v34
    %v36 = vld [vmem:[#allocation2 + $0x8] sm:$0xff]
    %v37 = vadd.f32 %v33, %v36
    %v38 = vmul.f32 %v36, %v36
    %v39 = vadd.f32 %v35, %v38
    %40 = vst [vmem:[#allocation5] sm:$0xff] %v37
    %41 = vst [vmem:[#allocation6] sm:$0xff] %v39
    // Predicated region
    $region14: #{tpu_custom_call.1} parent=1 // pred_check
      _
    $region15: #{tpu_custom_call.1} parent=1 // pred_check_branch
      %43 = sbr.rel (0) target = $region17
    $region16: #{tpu_custom_call.1} parent=1 // pred_region
      %s45 = ssub.s32 128, 128
      %46 = vsyncadd [#allocation4], %s45
      %s48 = sshll.u32 [#allocation5], 4
      %s49 = int_to_ptr.vmem [resolvable:$true] %s48
      %51 = dma.vmem_to_hbm [thread:$0]  %s49, 128, %s1, [#allocation4]
    $region17: #{tpu_custom_call.1} parent=1 // pred_fallthru
      _
    // Predicated region
    $region18: #{tpu_custom_call.1} parent=1 // pred_check
      _
    $region19: #{tpu_custom_call.1} parent=1 // pred_check_branch
      %53 = sbr.rel (0) target = $region21
    $region20: #{tpu_custom_call.1} parent=1 // pred_region
      %s55 = ssub.s32 128, 128
      %56 = vsyncadd [#allocation7], %s55
      %s58 = sshll.u32 [#allocation6], 4
      %s59 = int_to_ptr.vmem [resolvable:$true] %s58
      %61 = dma.vmem_to_hbm [thread:$0]  %s59, 128, %s2, [#allocation7]
    $region21: #{tpu_custom_call.1} parent=1 // pred_fallthru
      _
    // Predicated region
    $region22: #{tpu_custom_call.1} parent=1 // pred_check
      _
    $region23: #{tpu_custom_call.1} parent=1 // pred_check_branch
      %63 = sbr.rel (0) target = $region25
    $region24: #{tpu_custom_call.1} parent=1 // pred_region
      %64 = dma.done [#allocation4], 128
    $region25: #{tpu_custom_call.1} parent=1 // pred_fallthru
      _
    // Predicated region
    $region26: #{tpu_custom_call.1} parent=1 // pred_check
      _
    $region27: #{tpu_custom_call.1} parent=1 // pred_check_branch
      %66 = sbr.rel (0) target = $region29
    $region28: #{tpu_custom_call.1} parent=1 // pred_region
      %67 = dma.done [#allocation7], 128
    $region29: #{tpu_custom_call.1} parent=1 // pred_fallthru
      _
    %68 = vsyncpa [#allocation3], 1
    %69 = vsyncpa [#allocation4], 1
    %70 = vsyncpa [#allocation7], 1

</llo_original>
